<compile_context>
chip_gen: v7x
topology: tpu7x:2x2x1
jax: 0.10.0
libtpu: 0.0.40
codegen_flags: <defaults>
</compile_context>

<pallas_src>
import jax
import jax.numpy as jnp
from jax.experimental import pallas as pl
from jax.experimental.pallas import tpu as pltpu

_LANE = 128


def _cdiv(a, b):
    return -(-a // b)


def _round_up(a, m):
    return _cdiv(a, m) * m


def _interp_matrix(out_size: int, in_size: int) -> jnp.ndarray:
    """Row-stochastic bilinear interpolation matrix (align_corners=False)."""
    scale = in_size / out_size
    out_idx = jnp.arange(out_size)
    src = (out_idx.astype(jnp.float32) + 0.5) * scale - 0.5
    src = jnp.clip(src, 0.0, float(in_size - 1))
    i0 = jnp.floor(src).astype(jnp.int32)
    i1 = jnp.minimum(i0 + 1, in_size - 1)
    frac = src - i0.astype(jnp.float32)
    m = jnp.zeros((out_size, in_size), dtype=jnp.float32)
    m = m.at[out_idx, i0].add(1.0 - frac)
    m = m.at[out_idx, i1].add(frac)
    return m


def _upsample_kernel(wh_ref, wwt_ref, x_ref, o_ref):
    # wh_ref : (Ho, H)      row-interp matrix (f32, or bf16 for bf16 inputs)
    # wwt_ref: (W, TWO)     transposed col-interp tile
    # x_ref  : (B, H, W)    batch of (n, c) images, native dtype
    # o_ref  : (B, Ho, TWO) output tile, native dtype
    wh = wh_ref[...]
    wwt = wwt_ref[...]

    def body(i, carry):
        xi = x_ref[i]                                                # (H, W)
        # Width pass on the MXU, f32 accumulation.
        ti = jnp.dot(xi, wwt, preferred_element_type=jnp.float32)    # (H, TWO)
        ti = ti.astype(x_ref.dtype)       # bf16 inputs keep bf16 MXU passes
        # Height pass; result goes straight to this image's output slice, so
        # no (B, Ho, TWO) f32 temp and no broadcast copy of Wh ever exists.
        oi = jnp.dot(wh, ti, preferred_element_type=jnp.float32)     # (Ho, TWO)
        o_ref[i] = oi.astype(o_ref.dtype)
        return carry

    jax.lax.fori_loop(0, x_ref.shape[0], body, 0)


def _vmem_capacity_bytes() -> int:
    """Physical VMEM per core (v5e/v6e: 128 MiB, v7x: 64 MiB); safe fallback."""
    try:
        cap = int(getattr(pltpu.get_tpu_info(), "vmem_capacity_bytes", 0))
        if cap > 0:
            return cap
    except Exception:
        pass
    return 64 * 1024 * 1024   # v7x-safe default


def _plan_blocks(nc, h, w, ho, wo, itemsize, budget):
    """Pick (images per step B, output-column tile TWO, column-grid size)."""
    wpad = _round_up(w, _LANE)
    hpad = _round_up(h, _LANE)

    def fixed_bytes(two_pad):
        # Wh / Ww^T blocks (worst case: double-buffered, f32) + per-image temps.
        weights = 2 * 4 * (ho * hpad + w * two_pad)
        temps = (4 + itemsize) * (h + ho) * two_pad + itemsize * h * wpad
        return weights + temps

    def per_image_bytes(two_pad):
        # Double-buffered input and output blocks, per image.
        return 2 * itemsize * (h * wpad + ho * two_pad)

    # 1) Output-column tile: full Wo if a single image fits the budget,
    #    otherwise the largest multiple of 128 that does (floor: 128).
    candidates = [wo] + list(range(_round_up(wo, _LANE) - _LANE, 0, -_LANE))
    two = None
    for cand in candidates:
        cpad = _round_up(cand, _LANE)
        if fixed_bytes(cpad) + per_image_bytes(cpad) <= budget:
            two = cand
            break
    if two is None:
        # TODO(synk): H-row tiling for this case; rely on vmem_limit headroom.
        two = min(wo, _LANE)
    two_pad = _round_up(two, _LANE)
    grid_w = _cdiv(wo, two)

    # 2) Images per step: as many as fit the remaining budget.
    avail = max(budget - fixed_bytes(two_pad), per_image_bytes(two_pad))
    b = int(max(1, min(nc, avail // per_image_bytes(two_pad))))

    def out_block_bytes(bb):
        return bb * ho * two_pad * itemsize

    # 3) >= 4 total grid steps when each step still writes >= ~1 MiB
    #    (lets the BlockSpec pipeline overlap prefetch/compute/writeback).
    if _cdiv(nc, b) * grid_w < 4:
        cand = _cdiv(nc, max(1, _cdiv(4, grid_w)))
        if cand < b and out_block_bytes(cand) >= (1 << 20):
            b = cand
    # 4) >= 2 total steps unconditionally (feed both v7x TensorCores).
    if _cdiv(nc, b) * grid_w < 2 and nc > 1:
        b = _cdiv(nc, 2)
    # 5) Even total step count (balanced megacore split) when reachable.
    steps_nc = _cdiv(nc, b)
    if (steps_nc * grid_w) % 2 == 1 and nc > 1:
        cand = _cdiv(nc, steps_nc + 1)
        if (_cdiv(nc, cand) * grid_w) % 2 == 0:
            b = cand
    return int(b), int(two), int(grid_w)


def upsample_bilinear(x: jnp.ndarray, factor: int = 2, shape=None) -> jnp.ndarray:
    """Bilinear upsample of an NCHW tensor by `factor` (or to explicit `shape`)."""
    n, c, h, w = x.shape
    if shape is not None:
        ho, wo = shape
    else:
        ho, wo = h * factor, w * factor
    nc = n * c

    # bf16 inputs get bf16 interp weights (exact for factor-2 taps); f32
    # accumulation stays via preferred_element_type inside the kernel.
    wdtype = jnp.bfloat16 if x.dtype == jnp.bfloat16 else jnp.float32
    wh = _interp_matrix(ho, h).astype(wdtype)        # (Ho, H)
    wwt = _interp_matrix(wo, w).T.astype(wdtype)     # (W, Wo)

    x_flat = x.reshape(nc, h, w)                     # free: no data movement
    itemsize = jnp.dtype(x.dtype).itemsize

    vmem_cap = _vmem_capacity_bytes()
    budget = (vmem_cap * 7) // 16                    # block working-set target
    vmem_limit = (vmem_cap * 25) // 32               # leave compiler headroom
    b, two, grid_w = _plan_blocks(nc, h, w, ho, wo, itemsize, budget)
    grid = (_cdiv(nc, b), grid_w)

    flops = 2 * nc * (h * w * wo + ho * h * wo)
    weight_bytes = (wh.size + wwt.size) * jnp.dtype(wdtype).itemsize
    bytes_accessed = nc * (h * w + ho * wo) * itemsize + weight_bytes
    cost = pl.CostEstimate(flops=flops, bytes_accessed=bytes_accessed,
                           transcendentals=0)

    def build(single_buffer_weights):
        # Constant-index weight blocks gain nothing from double-buffering;
        # Buffered(1) frees their second VMEM copy (matters on v7x's 64 MiB).
        wh_kw = {"pipeline_mode": pl.Buffered(1)} if single_buffer_weights else {}
        wwt_kw = ({"pipeline_mode": pl.Buffered(1)}
                  if single_buffer_weights and grid_w == 1 else {})
        return pl.pallas_call(
            _upsample_kernel,
            out_shape=jax.ShapeDtypeStruct((nc, ho, wo), x.dtype),
            grid_spec=pltpu.PrefetchScalarGridSpec(
                num_scalar_prefetch=0,
                grid=grid,
                in_specs=[
                    pl.BlockSpec((ho, h), lambda i, j: (0, 0), **wh_kw),   # Wh
                    pl.BlockSpec((w, two), lambda i, j: (0, j), **wwt_kw),  # Ww^T
                    pl.BlockSpec((b, h, w), lambda i, j: (i, 0, 0)),        # images
                ],
                out_specs=pl.BlockSpec((b, ho, two), lambda i, j: (i, 0, j)),
            ),
            compiler_params=pltpu.CompilerParams(
                dimension_semantics=("parallel", "parallel"),
                vmem_limit_bytes=vmem_limit,
            ),
            cost_estimate=cost,
        )

    # Only try single-buffered weights when they are big enough to matter, and
    # fall back to the plain (always-supported) specs on any lowering issue.
    attempts = [True, False] if weight_bytes >= (1 << 20) else [False]
    out_flat, last_err = None, None
    for single in attempts:
        try:
            out_flat = build(single)(wh, wwt, x_flat)
            break
        except Exception as err:   # retry with plain double-buffered specs
            last_err = err
    if out_flat is None:
        raise last_err

    return out_flat.reshape(n, c, ho, wo)


if __name__ == "__main__":
    key = jax.random.PRNGKey(0)
    # small NCHW input consistent with the module's conv conventions
    x = jax.random.normal(key, (2, 4, 16, 16), dtype=jnp.float32)

    out = upsample_bilinear(x, factor=2)
    out = jax.block_until_ready(out)

    assert out.shape == (2, 4, 32, 32), out.shape
    assert out.dtype == x.dtype, out.dtype

    # reference: same separable bilinear matrices applied with plain einsum
    wh = _interp_matrix(32, 16)
    ww = _interp_matrix(32, 16)
    ref = jnp.einsum("oh,nchw,pw->ncop", wh, x, ww)
    err = float(jnp.max(jnp.abs(out - ref)))
    assert err < 1e-4, err

    print("KERNEL_OK")
</pallas_src>

<mosaic_0001>
module attributes {stable_mosaic.version = 11 : i64} {
  func.func @_upsample_kernel(%arg0: i32, %arg1: i32, %arg2: memref<32x16xf32, #tpu.memory_space<vmem>>, %arg3: memref<16x32xf32, #tpu.memory_space<vmem>>, %arg4: memref<4x16x16xf32, #tpu.memory_space<vmem>>, %arg5: memref<4x32x32xf32, #tpu.memory_space<vmem>>) attributes {dimension_semantics = [#tpu.dimension_semantics<parallel>, #tpu.dimension_semantics<parallel>], iteration_bounds = array<i64: 2, 1>, scalar_prefetch = 0 : i64, scratch_operands = 0 : i64, tpu.core_type = #tpu.core_type<tc>, window_params = [{pipeline_mode = #tpu.pipeline_mode<synchronous>, transform_indices = @transform_0, window_bounds = array<i64: 32, 16>}, {transform_indices = @transform_1, window_bounds = array<i64: 16, 32>}, {transform_indices = @transform_2, window_bounds = array<i64: 4, 16, 16>}, {transform_indices = @transform_3, window_bounds = array<i64: 4, 32, 32>}]} {
    %c0 = arith.constant 0 : index
    %c0_0 = arith.constant 0 : index
    %0 = vector.load %arg2[%c0, %c0_0] : memref<32x16xf32, #tpu.memory_space<vmem>>, vector<32x16xf32>
    %c0_1 = arith.constant 0 : index
    %c0_2 = arith.constant 0 : index
    %1 = vector.load %arg3[%c0_1, %c0_2] : memref<16x32xf32, #tpu.memory_space<vmem>>, vector<16x32xf32>
    %c0_i32 = arith.constant 0 : i32
    %c4_i32 = arith.constant 4 : i32
    %2 = arith.addi %c0_i32, %c4_i32 : i32
    %c1_i32 = arith.constant 1 : i32
    scf.for %arg6 = %c0_i32 to %2 step %c1_i32  : i32 {
      %3 = arith.index_cast %arg6 : i32 to index
      %c0_4 = arith.constant 0 : index
      %c0_5 = arith.constant 0 : index
      %4 = vector.load %arg4[%3, %c0_4, %c0_5] : memref<4x16x16xf32, #tpu.memory_space<vmem>>, vector<1x16x16xf32>
      %5 = vector.shape_cast %4 : vector<1x16x16xf32> to vector<16x16xf32>
      %cst = arith.constant dense<0.000000e+00> : vector<16x32xf32>
      %6 = tpu.matmul %5, %1, %cst {dimension_numbers = #tpu.dot_dimension_numbers<[1], [0], [0], [1], [0, 0, 1, 1], [], []>} : vector<16x16xf32>, vector<16x32xf32>, vector<16x32xf32> -> vector<16x32xf32>
      %cst_6 = arith.constant dense<0.000000e+00> : vector<32x32xf32>
      %7 = tpu.matmul %0, %6, %cst_6 {dimension_numbers = #tpu.dot_dimension_numbers<[1], [0], [0], [1], [0, 0, 1, 1], [], []>} : vector<32x16xf32>, vector<16x32xf32>, vector<32x32xf32> -> vector<32x32xf32>
      %8 = arith.index_cast %arg6 : i32 to index
      %c0_7 = arith.constant 0 : index
      %c0_8 = arith.constant 0 : index
      %9 = vector.load %arg5[%8, %c0_7, %c0_8] : memref<4x32x32xf32, #tpu.memory_space<vmem>>, vector<1x32x32xf32>
      %10 = vector.shape_cast %9 : vector<1x32x32xf32> to vector<32x32xf32>
      %11 = vector.shape_cast %7 : vector<32x32xf32> to vector<1x32x32xf32>
      tpu.vector_store %arg5[%8, %c0_7, %c0_8], %11 {strides = array<i32>} : memref<4x32x32xf32, #tpu.memory_space<vmem>>, vector<1x32x32xf32>,
    }
    %c4_i32_3 = arith.constant 4 : i32
    return
  }
  func.func @transform_0(%arg0: i32, %arg1: i32) -> (i32, i32) {
    %c0_i32 = arith.constant 0 : i32
    %c0_i32_0 = arith.constant 0 : i32
    %c0_i32_1 = arith.constant 0 : i32
    return %c0_i32, %c0_i32_0 : i32, i32
  }
  func.func @transform_1(%arg0: i32, %arg1: i32) -> (i32, i32) {
    %c0_i32 = arith.constant 0 : i32
    %c0_i32_0 = arith.constant 0 : i32
    return %c0_i32, %arg1 : i32, i32
  }
  func.func @transform_2(%arg0: i32, %arg1: i32) -> (i32, i32, i32) {
    %c0_i32 = arith.constant 0 : i32
    %c0_i32_0 = arith.constant 0 : i32
    %c0_i32_1 = arith.constant 0 : i32
    return %arg0, %c0_i32, %c0_i32_0 : i32, i32, i32
  }
  func.func @transform_3(%arg0: i32, %arg1: i32) -> (i32, i32, i32) {
    %c0_i32 = arith.constant 0 : i32
    %c0_i32_0 = arith.constant 0 : i32
    return %arg0, %c0_i32, %arg1 : i32, i32, i32
  }
}

</mosaic_0001>

<llo_original>
// kernel: tpu_custom_call.1
$region0: #{tpu_custom_call.1}
  #allocation0 [shape = 'u32[]', space=smem, size = 0x4, offset = 0x4, fixed_abs, tag = 'smem constant byte address 0x4 - core index']
  #allocation1 [shape = 'u32[144,128]{1,0:T(1,128)}', space=vmem, size = 0x12000, scoped, tag = 'internal scratch']
  %s0 = inlined_call_operand.vmem [shape: f32[32,16], index: 0, kind: input, shape index: {}]
  %s1 = inlined_call_operand.vmem [shape: f32[16,32], index: 1, kind: input, shape index: {}]
  %s2 = inlined_call_operand.hbm [shape: f32[8,16,16], index: 2, kind: input, shape index: {}]
  %s3 = inlined_call_operand.hbm [shape: f32[8,32,32], index: 3, kind: output, shape index: {}]
  %s4 = sld [smem:[#allocation0]]
  $region56: #{tpu_custom_call.1} parent=0
    _
  %s6 = ssub.s32 1, %s4
  %s7 = scalar_select 0, %s6, %s4
  $region1: #{tpu_custom_call.1} parent=0
    #allocation2 [shape = 'u8[65536]{0}', space=vmem, size = 0x10000, scoped, tag = 'input window, operand 2']
    #allocation3 [shape = 's32[2]{0}', space=sflag, size = 0x8, scoped, tag = 'scoped memory for tpu_custom_call.1']
    #allocation4 [shape = 's32[2]{0}', space=sflag, size = 0x8, scoped, tag = 'scoped memory for tpu_custom_call.1']
    #allocation5 [shape = 'u8[131072]{0}', space=vmem, size = 0x20000, scoped, tag = 'output window, operand 0']
    %8 = vsyncpa [#allocation3], 0
    %s9 = scalar_lea.sflag [#allocation3], 1
    %10 = vsyncpa %s9, 0
    %11 = vsyncpa [#allocation4], 0
    %s12 = scalar_lea.sflag [#allocation4], 1
    %13 = vsyncpa %s12, 0
    loop: start=0, step=1, limit=4
    $region2: #{tpu_custom_call.1} parent=1 // loop_pre_header
      _
    $region3: #{tpu_custom_call.1} parent=1 // loop_header
      %s15 = sphi 0, %s19
      %p16 = scmp.ge.s32.totalorder %s15, 4
      %s22 = sphi 0, %s34
      %s23 = sphi 0, %s30
      %s24 = sphi 0, %s22
      %s25 = sphi 0, %s23
      %s26 = sphi 0, %s24
      %s27 = sphi 0, %s25
      %s35 = sphi 0, %s35
      %s37 = sphi 0, %s35
      %s38 = sphi 0, %s37
      %s52 = sphi 0, %s38
      %s58 = sphi 0, %s60
      %s61 = sphi 0, %s58
      %s62 = sphi 0, %s61
      %s78 = sphi 0, %s62
      %s84 = sphi 0, %s86
      %s87 = sphi 0, %s84
      %s88 = sphi 0, %s87
      %s104 = sphi 0, %s88
      %s112 = sphi 0, %s114
      %s115 = sphi 0, %s112
      %s116 = sphi 0, %s115
      %s132 = sphi 0, %s116
    $region4: #{tpu_custom_call.1} parent=1 // loop_header_branch
      %18 = sbr.rel (%p16) target = $region8
    $region5: #{tpu_custom_call.1} parent=1 // loop_body
      %s20 = ssub.s32 %s15, 1
      %s21 = ssub.s32 %s15, 2
      %s28 = sadd.s32 1, %s23
      %p29 = scmp.ge.s32.totalorder %s28, 1
      %s30 = scalar_select %p29, 0, %s28
      %s31 = sadd.s32 1, %s22
      %s32 = scalar_select %p29, %s31, %s22
      %p33 = scmp.ge.s32.totalorder %s32, 2
      %s34 = scalar_select %p33, 0, %s32
      %s36 = sadd.s32 %s35, 1
      %p39 = scmp.eq.s32.totalorder %s15, 1
      %p40 = scmp.ne.s32.totalorder %s35, %s37
      %p41 = scmp.eq.s32.totalorder %s15, 0
      %p42 = por %p40, %p41
      %p43 = scmp.ne.s32.totalorder %s35, %s37
      %p44 = scmp.eq.s32.totalorder %s20, 1
      %p45 = por %p43, %p44
      %p46 = scmp.ne.s32.totalorder %s37, %s38
      %p47 = scmp.eq.s32.totalorder %s20, 0
      %p48 = por %p46, %p47
      %p49 = scmp.ne.s32.totalorder %s37, %s38
      %p50 = scmp.eq.s32.totalorder %s21, 1
      %p51 = por %p49, %p50
      %p53 = scmp.ne.s32.totalorder %s38, %s52
      %p54 = scmp.eq.s32.totalorder %s21, 0
      %p55 = por %p53, %p54
      %s56 = ssub.s32 %s23, %s30
      %p57 = scmp.eq.s32.totalorder %s56, 0
      %s59 = sadd.s32 %s58, 1
      %s60 = scalar_select %p57, %s58, %s59
      %p63 = pneg %p57
      %p64 = scmp.eq.s32.totalorder %s15, 1
      %p65 = por %p63, %p64
      %p66 = scmp.ne.s32.totalorder %s58, %s61
      %p67 = scmp.eq.s32.totalorder %s15, 0
      %p68 = por %p66, %p67
      %p69 = scmp.ne.s32.totalorder %s58, %s61
      %p70 = scmp.eq.s32.totalorder %s20, 1
      %p71 = por %p69, %p70
      %p72 = scmp.ne.s32.totalorder %s61, %s62
      %p73 = scmp.eq.s32.totalorder %s20, 0
      %p74 = por %p72, %p73
      %p75 = scmp.ne.s32.totalorder %s61, %s62
      %p76 = scmp.eq.s32.totalorder %s21, 1
      %p77 = por %p75, %p76
      %p79 = scmp.ne.s32.totalorder %s62, %s78
      %p80 = scmp.eq.s32.totalorder %s21, 0
      %p81 = por %p79, %p80
      %s82 = ssub.s32 %s22, %s34
      %p83 = scmp.eq.s32.totalorder %s82, 0
      %s85 = sadd.s32 %s84, 1
      %s86 = scalar_select %p83, %s84, %s85
      %p89 = pneg %p83
      %p90 = scmp.eq.s32.totalorder %s15, 1
      %p91 = por %p89, %p90
      %p92 = scmp.ne.s32.totalorder %s84, %s87
      %p93 = scmp.eq.s32.totalorder %s15, 0
      %p94 = por %p92, %p93
      %p95 = scmp.ne.s32.totalorder %s84, %s87
      %p96 = scmp.eq.s32.totalorder %s20, 1
      %p97 = por %p95, %p96
      %p98 = scmp.ne.s32.totalorder %s87, %s88
      %p99 = scmp.eq.s32.totalorder %s20, 0
      %p100 = por %p98, %p99
      %p101 = scmp.ne.s32.totalorder %s87, %s88
      %p102 = scmp.eq.s32.totalorder %s21, 1
      %p103 = por %p101, %p102
      %p105 = scmp.ne.s32.totalorder %s88, %s104
      %p106 = scmp.eq.s32.totalorder %s21, 0
      %p107 = por %p105, %p106
      %s108 = ssub.s32 %s22, %s34
      %s109 = ssub.s32 %s23, %s30
      %s110 = sor.u32 %s108, %s109
      %p111 = scmp.eq.s32.totalorder %s110, 0
      %s113 = sadd.s32 %s112, 1
      %s114 = scalar_select %p111, %s112, %s113
      %p117 = pneg %p111
      %p118 = scmp.eq.s32.totalorder %s15, 1
      %p119 = por %p117, %p118
      %p120 = scmp.ne.s32.totalorder %s112, %s115
      %p121 = scmp.eq.s32.totalorder %s15, 0
      %p122 = por %p120, %p121
      %p123 = scmp.ne.s32.totalorder %s112, %s115
      %p124 = scmp.eq.s32.totalorder %s20, 1
      %p125 = por %p123, %p124
      %p126 = scmp.ne.s32.totalorder %s115, %s116
      %p127 = scmp.eq.s32.totalorder %s20, 0
      %p128 = por %p126, %p127
      %p129 = scmp.ne.s32.totalorder %s115, %s116
      %p130 = scmp.eq.s32.totalorder %s21, 1
      %p131 = por %p129, %p130
      %p133 = scmp.ne.s32.totalorder %s116, %s132
      %p134 = scmp.eq.s32.totalorder %s21, 0
      %p135 = por %p133, %p134
      %p136 = scmp.le.s32.totalorder 1, %s15
      %p137 = scmp.lt.s32.totalorder %s15, 3
      %p138 = pnand %p136, %p137
      %p139 = pneg %p138
      // Predicated region
      $region9: #{tpu_custom_call.1} parent=5 // pred_check
        _
      $region10: #{tpu_custom_call.1} parent=5 // pred_check_branch
        %141 = sbr.rel (%p138) target = $region12
      $region11: #{tpu_custom_call.1} parent=5 // pred_region
        %s142 = ssub.s32 %s15, 1
        // Predicated region
        $region13: #{tpu_custom_call.1} parent=11 // pred_check
          %p143 = pneg %p48
        $region14: #{tpu_custom_call.1} parent=11 // pred_check_branch
          %145 = sbr.rel (%p143) target = $region16
        $region15: #{tpu_custom_call.1} parent=11 // pred_region
          _
        $region16: #{tpu_custom_call.1} parent=11 // pred_fallthru
          _
        // Predicated region
        $region17: #{tpu_custom_call.1} parent=11 // pred_check
          %p146 = pneg %p74
        $region18: #{tpu_custom_call.1} parent=11 // pred_check_branch
          %148 = sbr.rel (%p146) target = $region20
        $region19: #{tpu_custom_call.1} parent=11 // pred_region
          %p149 = scmp.lt.s32.totalorder %s25, 0
          %s150 = scalar_select %p149, %s25, 0
          %s151 = smul.addr %s150, 8
          %s152 = scalar_lea.vmem %s1, %s151
        $region20: #{tpu_custom_call.1} parent=11 // pred_fallthru
          _
      $region12: #{tpu_custom_call.1} parent=5 // pred_fallthru
        _
      %p153 = scmp.lt.s32.totalorder %s15, 2
      // Predicated region
      $region21: #{tpu_custom_call.1} parent=5 // pred_check
        %p154 = pneg %p153
      $region22: #{tpu_custom_call.1} parent=5 // pred_check_branch
        %156 = sbr.rel (%p154) target = $region24
      $region23: #{tpu_custom_call.1} parent=5 // pred_region
        // Predicated region
        $region25: #{tpu_custom_call.1} parent=23 // pred_check
          %p157 = pneg %p94
        $region26: #{tpu_custom_call.1} parent=23 // pred_check_branch
          %159 = sbr.rel (%p157) target = $region28
        $region27: #{tpu_custom_call.1} parent=23 // pred_region
          %s160 = sand.u32 %s84, 1
          %s161 = scalar_lea.sflag [#allocation3], %s160
          %s162 = sand.u32 %s84, 1
          %s163 = smul.addr %s162, 64
          %s164 = scalar_lea.vmem [#allocation2], %s163
          %s165 = smul.u32 4, %s22
          %s167 = ssub.s32 1024, 1024
          %168 = vsyncadd %s161, %s167
          %s169 = smul.addr %s165, 2
          %s170 = smul.addr %s169, 128
          %s171 = scalar_lea.hbm %s2, %s170
          %s172 = sshll.u32 %s164, 4
          %s173 = int_to_ptr.vmem [resolvable:$true] %s172
          %178 = dma.hbm_to_vmem [thread:$0]  %s171, 1024, %s173, %s161, 128, 128, 8
        $region28: #{tpu_custom_call.1} parent=23 // pred_fallthru
          _
      $region24: #{tpu_custom_call.1} parent=5 // pred_fallthru
        _
      %p179 = scmp.le.s32.totalorder 1, %s15
      %p180 = scmp.lt.s32.totalorder %s15, 3
      %p181 = pnand %p179, %p180
      %p182 = pneg %p181
      // Predicated region
      $region29: #{tpu_custom_call.1} parent=5 // pred_check
        _
      $region30: #{tpu_custom_call.1} parent=5 // pred_check_branch
        %184 = sbr.rel (%p181) target = $region32
      $region31: #{tpu_custom_call.1} parent=5 // pred_region
        %s185 = ssub.s32 %s15, 1
        %s186 = sand.u32 %s87, 1
        %s187 = scalar_lea.sflag [#allocation3], %s186
        %s188 = sand.u32 %s87, 1
        %s189 = smul.addr %s188, 64
        %s190 = scalar_lea.vmem [#allocation2], %s189
        // Predicated region
        $region33: #{tpu_custom_call.1} parent=31 // pred_check
          %p191 = pneg %p100
        $region34: #{tpu_custom_call.1} parent=31 // pred_check_branch
          %193 = sbr.rel (%p191) target = $region36
        $region35: #{tpu_custom_call.1} parent=31 // pred_region
          %194 = dma.done %s187, 1024
        $region36: #{tpu_custom_call.1} parent=31 // pred_fallthru
          _
        %p195 = pneg %p48
        %p196 = pneg %p45
        %p197 = scmp.lt.s32.totalorder %s25, 0
        %s198 = scalar_select %p197, %s25, 0
        %s199 = smul.addr %s198, 8
        %s200 = scalar_lea.vmem %s1, %s199
        %p201 = pneg %p74
        %p202 = pneg %p71
        %s203 = sand.u32 %s87, 1
        %s204 = scalar_lea.sflag [#allocation3], %s203
        %s205 = sand.u32 %s87, 1
        %s206 = smul.addr %s205, 64
        %s207 = scalar_lea.vmem [#allocation2], %s206
        %p208 = pneg %p100
        %p209 = pneg %p97
        %p210 = pneg %p128
        %p211 = pneg %p125
        %s212 = sand.u32 %s115, 1
        %s213 = scalar_lea.sflag [#allocation4], %s212
        %s214 = sand.u32 %s115, 1
        %s215 = smul.addr %s214, 128
        %s216 = scalar_lea.vmem [#allocation5], %s215
        %p217 = scmp.lt.s32.totalorder %s25, 0
        %s218 = scalar_select %p217, %s25, 0
        %s219 = smul.addr %s218, 8
        %s220 = scalar_lea.vmem %s1, %s219
        %s221 = smul.u32 4, %s24
        %s222 = smul.u32 4, %s24
        %v223 = vld [vmem:[%s0] sm:$0xff]
        %v224 = vld [vmem:[%s0 + $0x8] sm:$0xff]
        %v225 = vld [vmem:[%s0 + $0x10] sm:$0xff]
        %v226 = vld [vmem:[%s0 + $0x18] sm:$0xff]
        %v227 = vld [vmem:[%s220] sm:$0xff]
        %v228 = vld [vmem:[%s220 + $0x8] sm:$0xff]
        loop: start=0, step=1, limit=4
        $region37: #{tpu_custom_call.1} parent=31 // loop_pre_header
          _
        $region38: #{tpu_custom_call.1} parent=31 // loop_header
          %s230 = sphi 0, %s234
          %p231 = scmp.ge.s32.totalorder %s230, 4
        $region39: #{tpu_custom_call.1} parent=31 // loop_header_branch
          %233 = sbr.rel (%p231) target = $region43
        $region40: #{tpu_custom_call.1} parent=31 // loop_body
          %s235 = smul.u32 %s230, 16
          %s236 = scalar_lea.vmem %s190, %s235 [#allocation2]
          %v237 = vld [vmem:[%s236] sm:$0xff]
          %v238 = vld [vmem:[%s236 + $0x8] sm:$0xff]
          %vm239 = vcmask 130048
          %v241 = vsel %vm239, %v237, 0
          %v244 = vsel %vm239, %v238, 0
          %246 = vmatprep.subr.mxu0 0.0
          %247 = vmatpush1.msra.mxu0 %v227
          %248 = vmatprep.subr.mxu0 0.0
          %249 = vmatpush1.msra.mxu0 %v228
          %250 = vmatprep.subr.mxu0 0.0
          %251 = vmatpush1.msra.mxu0 0.0
          %252 = vmatprep.subr.mxu0 0.0
          %253 = vmatpush1.msra.mxu0 0.0
          %254 = vmatprep.subr.mxu0 0.0
          %255 = vmatpush1.msra.mxu0 0.0
          %256 = vmatprep.subr.mxu0 0.0
          %257 = vmatpush1.msra.mxu0 0.0
          %258 = vmatprep.subr.mxu0 0.0
          %259 = vmatpush1.msra.mxu0 0.0
          %260 = vmatprep.subr.mxu0 0.0
          %261 = vmatpush1.msra.mxu0 0.0
          %262 = vmatprep.subr.mxu0 0.0
          %263 = vmatpush1.msra.mxu0 0.0
          %264 = vmatprep.subr.mxu0 0.0
          %265 = vmatpush1.msra.mxu0 0.0
          %266 = vmatprep.subr.mxu0 0.0
          %267 = vmatpush1.msra.mxu0 0.0
          %268 = vmatprep.subr.mxu0 0.0
          %269 = vmatpush1.msra.mxu0 0.0
          %270 = vmatprep.subr.mxu0 0.0
          %271 = vmatpush1.msra.mxu0 0.0
          %272 = vmatprep.subr.mxu0 0.0
          %273 = vmatpush1.msra.mxu0 0.0
          %274 = vmatprep.subr.mxu0 0.0
          %275 = vmatpush1.msra.mxu0 0.0
          %276 = vmatprep.subr.mxu0 0.0
          %277 = vmatpush1.msra.mxu0 0.0
          %278 = vmatprep.subr.mxu0 0.0
          %279 = vmatpush1.msra.mxu0 0.0
          %280 = vmatprep.subr.mxu0 0.0
          %281 = vmatpush1.msra.mxu0 0.0
          %282 = vmatprep.subr.mxu0 0.0
          %283 = vmatpush1.msra.mxu0 0.0
          %284 = vmatprep.subr.mxu0 0.0
          %285 = vmatpush1.msra.mxu0 0.0
          %286 = vmatprep.subr.mxu0 0.0
          %287 = vmatpush1.msra.mxu0 0.0
          %288 = vmatprep.subr.mxu0 0.0
          %289 = vmatpush1.msra.mxu0 0.0
          %290 = vmatprep.subr.mxu0 0.0
          %291 = vmatpush1.msra.mxu0 0.0
          %292 = vmatprep.subr.mxu0 0.0
          %293 = vmatpush1.msra.mxu0 0.0
          %294 = vmatprep.subr.mxu0 0.0
          %295 = vmatpush1.msra.mxu0 0.0
          %296 = vmatprep.subr.mxu0 0.0
          %297 = vmatpush1.msra.mxu0 0.0
          %298 = vmatprep.subr.mxu0 0.0
          %299 = vmatpush1.msra.mxu0 0.0
          %300 = vmatprep.subr.mxu0 0.0
          %301 = vmatpush1.msra.mxu0 0.0
          %302 = vmatprep.subr.mxu0 0.0
          %303 = vmatpush1.msra.mxu0 0.0
          %304 = vmatprep.subr.mxu0 0.0
          %305 = vmatpush1.msra.mxu0 0.0
          %306 = vmatprep.subr.mxu0 0.0
          %307 = vmatpush1.msra.mxu0 0.0
          %308 = vmatprep.subr.mxu0 0.0
          %309 = vmatpush1.msra.mxu0 0.0
          %310 = vmatprep.mubr.f32.mxu0 0.0
          %311 = vmatmul.mubr.f32.gmra.mrb[0].mxu0 %v241
          %v312 = vpop.f32.mrb[0].mxu0
          %v313 = vadd.f32 0.0, %v312
          %v314 = vpop.f32.mrb[0].mxu0
          %315 = vmatprep.mubr.f32.mxu0 0.0
          %316 = vmatmul.mubr.f32.gmra.mrb[0].mxu0 %v244
          %v317 = vpop.f32.mrb[0].mxu0
          %v318 = vadd.f32 0.0, %v317
          %v319 = vpop.f32.mrb[0].mxu0
          %320 = vdwg.mxu0
          %v322 = vsel %vm239, %v223, 0
          %v325 = vsel %vm239, %v224, 0
          %v328 = vsel %vm239, %v225, 0
          %v331 = vsel %vm239, %v226, 0
          %333 = vmatprep.subr.mxu0 0.0
          %334 = vmatpush1.msra.mxu0 %v313
          %335 = vmatprep.subr.mxu0 0.0
          %336 = vmatpush1.msra.mxu0 %v318
          %337 = vmatprep.subr.mxu0 0.0
          %338 = vmatpush1.msra.mxu0 0.0
          %339 = vmatprep.subr.mxu0 0.0
          %340 = vmatpush1.msra.mxu0 0.0
          %341 = vmatprep.subr.mxu0 0.0
          %342 = vmatpush1.msra.mxu0 0.0
          %343 = vmatprep.subr.mxu0 0.0
          %344 = vmatpush1.msra.mxu0 0.0
          %345 = vmatprep.subr.mxu0 0.0
          %346 = vmatpush1.msra.mxu0 0.0
          %347 = vmatprep.subr.mxu0 0.0
          %348 = vmatpush1.msra.mxu0 0.0
          %349 = vmatprep.subr.mxu0 0.0
          %350 = vmatpush1.msra.mxu0 0.0
          %351 = vmatprep.subr.mxu0 0.0
          %352 = vmatpush1.msra.mxu0 0.0
          %353 = vmatprep.subr.mxu0 0.0
          %354 = vmatpush1.msra.mxu0 0.0
          %355 = vmatprep.subr.mxu0 0.0
          %356 = vmatpush1.msra.mxu0 0.0
          %357 = vmatprep.subr.mxu0 0.0
          %358 = vmatpush1.msra.mxu0 0.0
          %359 = vmatprep.subr.mxu0 0.0
          %360 = vmatpush1.msra.mxu0 0.0
          %361 = vmatprep.subr.mxu0 0.0
          %362 = vmatpush1.msra.mxu0 0.0
          %363 = vmatprep.subr.mxu0 0.0
          %364 = vmatpush1.msra.mxu0 0.0
          %365 = vmatprep.subr.mxu0 0.0
          %366 = vmatpush1.msra.mxu0 0.0
          %367 = vmatprep.subr.mxu0 0.0
          %368 = vmatpush1.msra.mxu0 0.0
          %369 = vmatprep.subr.mxu0 0.0
          %370 = vmatpush1.msra.mxu0 0.0
          %371 = vmatprep.subr.mxu0 0.0
          %372 = vmatpush1.msra.mxu0 0.0
          %373 = vmatprep.subr.mxu0 0.0
          %374 = vmatpush1.msra.mxu0 0.0
          %375 = vmatprep.subr.mxu0 0.0
          %376 = vmatpush1.msra.mxu0 0.0
          %377 = vmatprep.subr.mxu0 0.0
          %378 = vmatpush1.msra.mxu0 0.0
          %379 = vmatprep.subr.mxu0 0.0
          %380 = vmatpush1.msra.mxu0 0.0
          %381 = vmatprep.subr.mxu0 0.0
          %382 = vmatpush1.msra.mxu0 0.0
          %383 = vmatprep.subr.mxu0 0.0
          %384 = vmatpush1.msra.mxu0 0.0
          %385 = vmatprep.subr.mxu0 0.0
          %386 = vmatpush1.msra.mxu0 0.0
          %387 = vmatprep.subr.mxu0 0.0
          %388 = vmatpush1.msra.mxu0 0.0
          %389 = vmatprep.subr.mxu0 0.0
          %390 = vmatpush1.msra.mxu0 0.0
          %391 = vmatprep.subr.mxu0 0.0
          %392 = vmatpush1.msra.mxu0 0.0
          %393 = vmatprep.subr.mxu0 0.0
          %394 = vmatpush1.msra.mxu0 0.0
          %395 = vmatprep.subr.mxu0 0.0
          %396 = vmatpush1.msra.mxu0 0.0
          %397 = vmatprep.mubr.f32.mxu0 0.0
          %398 = vmatmul.mubr.f32.gmra.mrb[0].mxu0 %v322
          %v399 = vpop.f32.mrb[0].mxu0
          %v400 = vadd.f32 0.0, %v399
          %v401 = vpop.f32.mrb[0].mxu0
          %402 = vmatprep.mubr.f32.mxu0 0.0
          %403 = vmatmul.mubr.f32.gmra.mrb[0].mxu0 %v325
          %v404 = vpop.f32.mrb[0].mxu0
          %v405 = vadd.f32 0.0, %v404
          %v406 = vpop.f32.mrb[0].mxu0
          %407 = vmatprep.mubr.f32.mxu0 0.0
          %408 = vmatmul.mubr.f32.gmra.mrb[0].mxu0 %v328
          %v409 = vpop.f32.mrb[0].mxu0
          %v410 = vadd.f32 0.0, %v409
          %v411 = vpop.f32.mrb[0].mxu0
          %412 = vmatprep.mubr.f32.mxu0 0.0
          %413 = vmatmul.mubr.f32.gmra.mrb[0].mxu0 %v331
          %v414 = vpop.f32.mrb[0].mxu0
          %v415 = vadd.f32 0.0, %v414
          %v416 = vpop.f32.mrb[0].mxu0
          %417 = vdwg.mxu0
          %s418 = smul.u32 %s230, 32
          %s419 = scalar_lea.vmem %s216, %s418 [#allocation5]
          %vm420 = vcmask 261120
          %421 = vst.msk [vmem:[%s419] sm:$0xff] %vm420, %v400
          %422 = vst.msk [vmem:[%s419 + $0x8] sm:$0xff] %vm420, %v405
          %423 = vst.msk [vmem:[%s419 + $0x10] sm:$0xff] %vm420, %v410
          %424 = vst.msk [vmem:[%s419 + $0x18] sm:$0xff] %vm420, %v415
        $region41: #{tpu_custom_call.1} parent=31 // loop_footer
          %s234 = sadd.s32 1, %s230
        $region42: #{tpu_custom_call.1} parent=31 // loop_footer_branch
          %229 = sbr.rel target = $region38
        $region43: #{tpu_custom_call.1} parent=31 // loop_exit
          _
        %s425 = sand.u32 %s115, 1
        %s426 = scalar_lea.sflag [#allocation4], %s425
        %s427 = sand.u32 %s115, 1
        %s428 = smul.addr %s427, 128
        %s429 = scalar_lea.vmem [#allocation5], %s428
        // Predicated region
        $region44: #{tpu_custom_call.1} parent=31 // pred_check
          %p430 = pneg %p125
        $region45: #{tpu_custom_call.1} parent=31 // pred_check_branch
          %432 = sbr.rel (%p430) target = $region47
        $region46: #{tpu_custom_call.1} parent=31 // pred_region
          %s433 = smul.u32 4, %s24
          %s435 = ssub.s32 2048, 2048
          %436 = vsyncadd %s426, %s435
          %s437 = smul.addr %s433, 4
          %s438 = sadd.s32 %s25, %s437
          %s439 = smul.addr %s438, 128
          %s440 = scalar_lea.hbm %s3, %s439
          %s441 = sshll.u32 %s429, 4
          %s442 = int_to_ptr.vmem [resolvable:$true] %s441
          %447 = dma.vmem_to_hbm [thread:$0]  %s442, 2048, %s440, %s426, 128, 128, 8
        $region47: #{tpu_custom_call.1} parent=31 // pred_fallthru
          _
      $region32: #{tpu_custom_call.1} parent=5 // pred_fallthru
        _
      %p448 = scmp.le.s32.totalorder 2, %s15
      // Predicated region
      $region48: #{tpu_custom_call.1} parent=5 // pred_check
        %p449 = pneg %p448
      $region49: #{tpu_custom_call.1} parent=5 // pred_check_branch
        %451 = sbr.rel (%p449) target = $region51
      $region50: #{tpu_custom_call.1} parent=5 // pred_region
        %s452 = ssub.s32 %s15, 2
        // Predicated region
        $region52: #{tpu_custom_call.1} parent=50 // pred_check
          %p453 = pneg %p131
        $region53: #{tpu_custom_call.1} parent=50 // pred_check_branch
          %455 = sbr.rel (%p453) target = $region55
        $region54: #{tpu_custom_call.1} parent=50 // pred_region
          %s456 = sand.u32 %s116, 1
          %s457 = scalar_lea.sflag [#allocation4], %s456
          %s458 = sand.u32 %s116, 1
          %s459 = smul.addr %s458, 128
          %s460 = scalar_lea.vmem [#allocation5], %s459
          %461 = dma.done %s457, 2048
        $region55: #{tpu_custom_call.1} parent=50 // pred_fallthru
          _
      $region51: #{tpu_custom_call.1} parent=5 // pred_fallthru
        _
    $region6: #{tpu_custom_call.1} parent=1 // loop_footer
      %s19 = sadd.s32 1, %s15
    $region7: #{tpu_custom_call.1} parent=1 // loop_footer_branch
      %14 = sbr.rel target = $region3
    $region8: #{tpu_custom_call.1} parent=1 // loop_exit
      _
    %462 = vsyncpa [#allocation3], 1
    %s463 = scalar_lea.sflag [#allocation3], 1
    %464 = vsyncpa %s463, 1
    %465 = vsyncpa [#allocation4], 1
    %s466 = scalar_lea.sflag [#allocation4], 1
    %467 = vsyncpa %s466, 1

</llo_original>
